<compile_context>
chip_gen: v5e
topology: v5e:2x2
jax: 0.10.0
libtpu: 0.0.40
codegen_flags: <defaults>
</compile_context>

<pallas_src>
import functools

import jax
import jax.numpy as jnp
from jax.experimental import pallas as pl
from jax.experimental.pallas import tpu as pltpu


def _round_up(x, m):
    return (x + m - 1) // m * m


def _usable_vmem_bytes():
    """Generation-aware usable scoped-VMEM budget (headroom below physical)."""
    cap = 64 * 1024 * 1024  # conservative default (v7x per-TensorCore VMEM)
    try:
        info = pltpu.get_tpu_info()
        cap = int(getattr(info, "vmem_capacity_bytes", cap))
    except Exception:
        pass
    return max(16 * 1024 * 1024, min(int(cap * 0.8), cap - 12 * 1024 * 1024))


def _stage_best(cur, tgt, w_t, b_t, *, num_options, param_size):
    """One refinement stage on the fused per-stage weights.

    cur: [TN, P] f32   current outputs
    tgt: [TN, P] f32   targets
    w_t: [P, O*P]      fused weights (f32 or bf16); option o in lanes o*P:(o+1)*P
    b_t: [1, O*P] f32  fused biases
    returns [TN, P] f32 per-row best-option output (earliest index wins ties,
    matching torch.argmin).
    """
    O, P = num_options, param_size
    # Single lane-dense MXU call; activations cast to the weight dtype (bf16 on
    # v6e/v7x -> fast MXU path + half the weight bytes), f32 accumulation.
    fused = jnp.dot(cur.astype(w_t.dtype), w_t,
                    preferred_element_type=jnp.float32) + b_t            # [TN, O*P]
    best_loss = None
    best_out = None
    # Per-option lane slices: no full-width diff/sq temporaries; the 1/P mean
    # scale is dropped (argmin is scale-invariant).
    # TODO(synk): for very large O*P, replace the per-slice XLU reductions with
    # one MXU matmul against a constant [O*P, O] block-indicator matrix.
    for o in range(O):
        out_o = fused[:, o * P:(o + 1) * P]                              # [TN, P]
        d = out_o - tgt
        loss_o = jnp.sum(d * d, axis=-1, keepdims=True)                  # [TN, 1]
        if o == 0:
            best_loss, best_out = loss_o, out_o
        else:
            take = loss_o < best_loss
            best_loss = jnp.where(take, loss_o, best_loss)
            best_out = jnp.where(take, out_o, best_out)
    return best_out


def _encoder_resident_kernel(targets_ref, w_ref, b_ref, out_ref, *,
                             num_stages, num_options, param_size):
    """Weights-resident path: grid=(row_tiles,) 'parallel'; stage loop in-kernel.

    targets_ref: [TN, P]
    w_ref:       [T, P, O*P]   (constant block index -> DMA'd once)
    b_ref:       [T, 1, O*P]
    out_ref:     [TN, T*P]     (stage t occupies lanes t*P:(t+1)*P)
    """
    T, O, P = num_stages, num_options, param_size
    tgt = targets_ref[...].astype(jnp.float32)
    cur = jnp.zeros(tgt.shape, jnp.float32)                # torch.zeros_like(targets)
    for t in range(T):                                     # T is small & static
        cur = _stage_best(cur, tgt, w_ref[t], b_ref[t],
                          num_options=O, param_size=P)
        out_ref[:, t * P:(t + 1) * P] = cur.astype(out_ref.dtype)


def _encoder_staged_kernel(targets_ref, w_ref, b_ref, out_ref, cur_ref, *,
                           num_options, param_size):
    """Weight-streaming path: grid=(row_tiles, T); per-stage fused weight slab
    is double-buffered by the BlockSpec pipeline (weight DMA overlaps compute).

    targets_ref: [TN, P]        (same block across the stage axis)
    w_ref:       [1, P, O*P]
    b_ref:       [1, 1, O*P]
    out_ref:     [TN, P]  (lane-dense [N, T*P] output)  or  [1, TN, P]
    cur_ref:     [TN, P]  VMEM scratch carried across stages
    """
    @pl.when(pl.program_id(1) == 0)
    def _():
        cur_ref[...] = jnp.zeros_like(cur_ref)

    best = _stage_best(cur_ref[...], targets_ref[...].astype(jnp.float32),
                       w_ref[0], b_ref[0],
                       num_options=num_options, param_size=param_size)
    cur_ref[...] = best
    out_ref[...] = best.reshape(out_ref.shape).astype(out_ref.dtype)


def prepare_encoder_params(weights, biases, *, compute_dtype=jnp.bfloat16):
    """Pre-fuse the per-option maps ONCE: [T,O,P,P] -> [T,P,O*P] (plus cast).

    Do this at parameter-load time and reuse across forward calls; re-fusing
    per call costs a full weight-sized HBM read+write before the kernel.
    """
    T, O, P, _ = weights.shape
    w_fused = jnp.transpose(weights, (0, 2, 1, 3)).reshape(T, P, O * P)
    w_fused = w_fused.astype(compute_dtype)
    b_fused = biases.reshape(T, 1, O * P).astype(jnp.float32)  # bias add stays f32
    return w_fused, b_fused


def encoder_forward_fused(targets, w_fused, b_fused, *, num_options,
                          force_staged=False, row_tile=None):
    """targets [N,P]; w_fused [T,P,O*P]; b_fused [T,1,O*P] -> [N, T, P] (f32)."""
    N, P = targets.shape
    T = w_fused.shape[0]
    O = num_options
    OP = O * P
    assert w_fused.shape == (T, P, OP) and b_fused.shape == (T, 1, OP)

    targets = targets.astype(jnp.float32)

    # --- batch tiling (fills the MXU M dim; bounds per-step VMEM; megacore) ---
    if row_tile is None:
        row_tile = 256 if _round_up(N, 8) >= 256 else _round_up(N, 8)
    assert row_tile % 8 == 0, "row_tile must be a multiple of 8 (sublane)"
    n_tiles = int(pl.cdiv(N, row_tile))
    n_pad = n_tiles * row_tile
    TN = row_tile
    if n_pad != N:
        targets_p = jnp.zeros((n_pad, P), jnp.float32).at[:N].set(targets)
    else:
        targets_p = targets

    # --- VMEM budgeting (generation-aware; always clamped below physical) ----
    usable_vmem = _usable_vmem_bytes()
    w_itemsize = jnp.dtype(w_fused.dtype).itemsize
    w_bytes = T * P * OP * w_itemsize
    b_bytes = T * 8 * OP * 4                         # sublane-padded biases
    tile_io = 2 * TN * P * 4 + 2 * TN * T * P * 4    # double-buffered in/out tiles
    temps = 4 * TN * OP * 4                          # fused + selection temporaries
    resident_bytes = 2 * (w_bytes + b_bytes) + tile_io + temps

    cost = pl.CostEstimate(
        flops=2 * T * n_pad * P * OP,
        transcendentals=0,
        bytes_accessed=w_bytes + T * OP * 4 + n_pad * P * 4 + n_pad * T * P * 4,
    )

    fits_resident = resident_bytes <= int(0.7 * usable_vmem)
    # With a single row tile, streaming one stage slab at a time overlaps the
    # weight DMA with compute at zero re-fetch cost -> prefer it once weights
    # are large even if they would fit VMEM.
    weight_bound = (n_tiles == 1 and w_bytes > 8 * 1024 * 1024)
    use_resident = fits_resident and (not force_staged) and (not weight_bound)

    if use_resident:
        kernel = functools.partial(_encoder_resident_kernel,
                                   num_stages=T, num_options=O, param_size=P)
        out_flat = pl.pallas_call(
            kernel,
            out_shape=jax.ShapeDtypeStruct((n_pad, T * P), jnp.float32),
            grid_spec=pltpu.PrefetchScalarGridSpec(
                num_scalar_prefetch=0,
                grid=(n_tiles,),
                in_specs=[
                    pl.BlockSpec((TN, P), lambda n: (n, 0)),
                    pl.BlockSpec((T, P, OP), lambda n: (0, 0, 0)),
                    pl.BlockSpec((T, 1, OP), lambda n: (0, 0, 0)),
                ],
                out_specs=pl.BlockSpec((TN, T * P), lambda n: (n, 0)),
            ),
            compiler_params=pltpu.CompilerParams(
                dimension_semantics=("parallel",),
                vmem_limit_bytes=usable_vmem,
            ),
            cost_estimate=cost,
        )(targets_p, w_fused, b_fused)
        # Row-major [N, T*P] -> [N, T, P] is a free reshape.
        return out_flat.reshape(n_pad, T, P)[:N]

    # --- staged fallback: stream one stage's fused weight slab per grid step --
    # (Default double-buffering of the weight BlockSpec already overlaps the
    #  per-stage weight DMA with compute; deeper pl.Buffered(k) would raise
    #  VMEM pressure exactly when this path is needed, so it is not used.)
    lane_dense = (P % 128 == 0)
    if lane_dense:
        out_shape = jax.ShapeDtypeStruct((n_pad, T * P), jnp.float32)
        out_spec = pl.BlockSpec((TN, P), lambda n, t: (n, t))
    else:
        # P not 128-aligned: keep stores full-block (no dynamic lane offsets);
        # costs one transpose pass on the result.
        out_shape = jax.ShapeDtypeStruct((T, n_pad, P), jnp.float32)
        out_spec = pl.BlockSpec((1, TN, P), lambda n, t: (t, n, 0))

    kernel = functools.partial(_encoder_staged_kernel,
                               num_options=O, param_size=P)
    out = pl.pallas_call(
        kernel,
        out_shape=out_shape,
        grid_spec=pltpu.PrefetchScalarGridSpec(
            num_scalar_prefetch=0,
            grid=(n_tiles, T),                      # stage axis innermost (carry)
            in_specs=[
                pl.BlockSpec((TN, P), lambda n, t: (n, 0)),
                pl.BlockSpec((1, P, OP), lambda n, t: (t, 0, 0)),
                pl.BlockSpec((1, 1, OP), lambda n, t: (t, 0, 0)),
            ],
            out_specs=out_spec,
            scratch_shapes=[pltpu.VMEM((TN, P), jnp.float32)],
        ),
        compiler_params=pltpu.CompilerParams(
            dimension_semantics=("parallel", "arbitrary"),
            vmem_limit_bytes=usable_vmem,
        ),
        cost_estimate=cost,
    )(targets_p, w_fused, b_fused)

    if lane_dense:
        return out.reshape(n_pad, T, P)[:N]
    return jnp.transpose(out, (1, 0, 2))[:N]


def encoder_forward(targets, weights, biases, *, compute_dtype=jnp.bfloat16,
                    force_staged=False, row_tile=None):
    """Convenience wrapper (prefer prepare_encoder_params() once + *_fused())."""
    w_fused, b_fused = prepare_encoder_params(weights, biases,
                                              compute_dtype=compute_dtype)
    return encoder_forward_fused(targets, w_fused, b_fused,
                                 num_options=weights.shape[1],
                                 force_staged=force_staged, row_tile=row_tile)


def encoder_forward_ref(targets, weights, biases, *, compute_dtype=jnp.float32):
    """Pure-JAX reference mirroring PyTorch Encoder.forward.  Uses the same
    fused-dot formulation as the kernel so the bf16-compute variant is directly
    comparable (same MXU math, f32 accumulation, same argmin tie-breaking)."""
    N, P = targets.shape
    T, O = weights.shape[0], weights.shape[1]
    w_fused = jnp.transpose(weights, (0, 2, 1, 3)).reshape(T, P, O * P)
    w_fused = w_fused.astype(compute_dtype)
    b_fused = biases.reshape(T, 1, O * P).astype(jnp.float32)
    cur = jnp.zeros_like(targets)
    results = []
    for t in range(T):
        fused = jnp.dot(cur.astype(compute_dtype), w_fused[t],
                        preferred_element_type=jnp.float32) + b_fused[t]
        outs = fused.reshape(N, O, P)
        losses = jnp.mean((outs - targets[:, None, :]) ** 2, axis=-1)
        idx = jnp.argmin(losses, axis=1)
        cur = outs[jnp.arange(N), idx]
        results.append(cur)
    return jnp.stack(results, axis=1)  # [N, T, P]


if __name__ == "__main__":
    key = jax.random.PRNGKey(0)

    def make_inputs(k, N, P, O, T):
        k_t, k_w, k_b = jax.random.split(k, 3)
        tg = jax.random.normal(k_t, (N, P), dtype=jnp.float32)
        ws = 0.1 * jax.random.normal(k_w, (T, O, P, P), dtype=jnp.float32)
        bs = 0.1 * jax.random.normal(k_b, (T, O, P), dtype=jnp.float32)
        return tg, ws, bs

    def check(out, ref, tag, atol=1e-4):
        assert out.shape == ref.shape, (tag, out.shape, ref.shape)
        err = float(jnp.max(jnp.abs(out - ref)))
        assert err <= atol, (tag, err)

    # --- config 1: small P=32 (non-128-aligned code paths) --------------------
    N, P, O, T = 8, 32, 4, 3
    targets, weights, biases = make_inputs(jax.random.fold_in(key, 1), N, P, O, T)
    ref32 = jax.block_until_ready(encoder_forward_ref(targets, weights, biases))

    w_f32, b_f32 = prepare_encoder_params(weights, biases, compute_dtype=jnp.float32)
    out = jax.block_until_ready(
        encoder_forward_fused(targets, w_f32, b_f32, num_options=O))
    check(out, ref32, "resident/f32/P32")
    out = jax.block_until_ready(
        encoder_forward_fused(targets, w_f32, b_f32, num_options=O, force_staged=True))
    check(out, ref32, "staged/f32/P32")

    # bf16 weights/activations on the MXU (f32 losses & selection), checked
    # against a bf16-matched reference.
    ref_bf16 = jax.block_until_ready(
        encoder_forward_ref(targets, weights, biases, compute_dtype=jnp.bfloat16))
    w_bf, b_bf = prepare_encoder_params(weights, biases, compute_dtype=jnp.bfloat16)
    out = jax.block_until_ready(
        encoder_forward_fused(targets, w_bf, b_bf, num_options=O))
    check(out, ref_bf16, "resident/bf16/P32", atol=1e-3)

    # --- config 2: lane-aligned P=128 (lane-dense staged output path) ---------
    N2, P2, O2, T2 = 8, 128, 2, 2
    t2, w2, b2 = make_inputs(jax.random.fold_in(key, 2), N2, P2, O2, T2)
    ref2 = jax.block_until_ready(encoder_forward_ref(t2, w2, b2))
    wf2, bf2 = prepare_encoder_params(w2, b2, compute_dtype=jnp.float32)
    out2 = jax.block_until_ready(
        encoder_forward_fused(t2, wf2, bf2, num_options=O2))
    check(out2, ref2, "resident/f32/P128")
    out2 = jax.block_until_ready(
        encoder_forward_fused(t2, wf2, bf2, num_options=O2, force_staged=True))
    check(out2, ref2, "staged/f32/P128")

    # --- config 3: N not a multiple of the row tile (padding + multi-tile) ----
    N3, P3, O3, T3 = 20, 32, 3, 2
    t3, w3, b3 = make_inputs(jax.random.fold_in(key, 3), N3, P3, O3, T3)
    ref3 = jax.block_until_ready(encoder_forward_ref(t3, w3, b3))
    wf3, bf3 = prepare_encoder_params(w3, b3, compute_dtype=jnp.float32)
    out3 = jax.block_until_ready(
        encoder_forward_fused(t3, wf3, bf3, num_options=O3, row_tile=8))
    check(out3, ref3, "resident/f32/multi-tile")
    out3 = jax.block_until_ready(
        encoder_forward_fused(t3, wf3, bf3, num_options=O3, row_tile=8,
                              force_staged=True))
    check(out3, ref3, "staged/f32/multi-tile")

    print("KERNEL_OK")
</pallas_src>

<mosaic_0001>
module attributes {stable_mosaic.version = 11 : i64} {
  func.func @_encoder_resident_kernel(%arg0: i32, %arg1: memref<8x32xf32, #tpu.memory_space<vmem>>, %arg2: memref<3x32x128xf32, #tpu.memory_space<vmem>>, %arg3: memref<3x1x128xf32, #tpu.memory_space<vmem>>, %arg4: memref<8x96xf32, #tpu.memory_space<vmem>>) attributes {dimension_semantics = [#tpu.dimension_semantics<parallel>], iteration_bounds = array<i64: 1>, scalar_prefetch = 0 : i64, scratch_operands = 0 : i64, tpu.core_type = #tpu.core_type<tc>, window_params = [{transform_indices = @transform_0, window_bounds = array<i64: 8, 32>}, {pipeline_mode = #tpu.pipeline_mode<synchronous>, transform_indices = @transform_1, window_bounds = array<i64: 3, 32, 128>}, {pipeline_mode = #tpu.pipeline_mode<synchronous>, transform_indices = @transform_2, window_bounds = array<i64: 3, 1, 128>}, {transform_indices = @transform_3, window_bounds = array<i64: 8, 96>}]} {
    %c0 = arith.constant 0 : index
    %c0_0 = arith.constant 0 : index
    %0 = vector.load %arg1[%c0, %c0_0] : memref<8x32xf32, #tpu.memory_space<vmem>>, vector<8x32xf32>
    %cst = arith.constant 0.000000e+00 : f32
    %1 = vector.broadcast %cst : f32 to vector<8x32xf32>
    %c0_1 = arith.constant 0 : index
    %c0_2 = arith.constant 0 : index
    %c0_3 = arith.constant 0 : index
    %2 = vector.load %arg2[%c0_1, %c0_2, %c0_3] : memref<3x32x128xf32, #tpu.memory_space<vmem>>, vector<1x32x128xf32>
    %3 = vector.shape_cast %2 : vector<1x32x128xf32> to vector<32x128xf32>
    %c0_4 = arith.constant 0 : index
    %c0_5 = arith.constant 0 : index
    %c0_6 = arith.constant 0 : index
    %4 = vector.load %arg3[%c0_4, %c0_5, %c0_6] : memref<3x1x128xf32, #tpu.memory_space<vmem>>, vector<1x1x128xf32>
    %5 = vector.shape_cast %4 : vector<1x1x128xf32> to vector<1x128xf32>
    %cst_7 = arith.constant dense<0.000000e+00> : vector<8x128xf32>
    %6 = tpu.matmul %1, %3, %cst_7 {dimension_numbers = #tpu.dot_dimension_numbers<[1], [0], [0], [1], [0, 0, 1, 1], [], []>} : vector<8x32xf32>, vector<32x128xf32>, vector<8x128xf32> -> vector<8x128xf32>
    %7 = vector.broadcast %5 : vector<1x128xf32> to vector<8x128xf32>
    %8 = arith.addf %6, %7 : vector<8x128xf32>
    %9 = vector.extract_strided_slice %8 {offsets = [0, 0], sizes = [8, 32], strides = [1, 1]} : vector<8x128xf32> to vector<8x32xf32>
    %10 = arith.subf %9, %0 : vector<8x32xf32>
    %11 = arith.mulf %10, %10 : vector<8x32xf32>
    %cst_8 = arith.constant dense<0.000000e+00> : vector<8xf32>
    %12 = vector.multi_reduction <add>, %11, %cst_8 [1] : vector<8x32xf32> to vector<8xf32>
    %13 = vector.shape_cast %12 : vector<8xf32> to vector<8x1xf32>
    %14 = vector.extract_strided_slice %8 {offsets = [0, 32], sizes = [8, 32], strides = [1, 1]} : vector<8x128xf32> to vector<8x32xf32>
    %15 = arith.subf %14, %0 : vector<8x32xf32>
    %16 = arith.mulf %15, %15 : vector<8x32xf32>
    %cst_9 = arith.constant dense<0.000000e+00> : vector<8xf32>
    %17 = vector.multi_reduction <add>, %16, %cst_9 [1] : vector<8x32xf32> to vector<8xf32>
    %18 = vector.shape_cast %17 : vector<8xf32> to vector<8x1xf32>
    %19 = arith.cmpf olt, %18, %13 : vector<8x1xf32>
    %20 = arith.select %19, %18, %13 : vector<8x1xi1>, vector<8x1xf32>
    %21 = vector.shape_cast %19 : vector<8x1xi1> to vector<8x1xi1>
    %22 = vector.broadcast %21 : vector<8x1xi1> to vector<8x32xi1>
    %23 = arith.select %22, %14, %9 : vector<8x32xi1>, vector<8x32xf32>
    %24 = vector.extract_strided_slice %8 {offsets = [0, 64], sizes = [8, 32], strides = [1, 1]} : vector<8x128xf32> to vector<8x32xf32>
    %25 = arith.subf %24, %0 : vector<8x32xf32>
    %26 = arith.mulf %25, %25 : vector<8x32xf32>
    %cst_10 = arith.constant dense<0.000000e+00> : vector<8xf32>
    %27 = vector.multi_reduction <add>, %26, %cst_10 [1] : vector<8x32xf32> to vector<8xf32>
    %28 = vector.shape_cast %27 : vector<8xf32> to vector<8x1xf32>
    %29 = arith.cmpf olt, %28, %20 : vector<8x1xf32>
    %30 = arith.select %29, %28, %20 : vector<8x1xi1>, vector<8x1xf32>
    %31 = vector.shape_cast %29 : vector<8x1xi1> to vector<8x1xi1>
    %32 = vector.broadcast %31 : vector<8x1xi1> to vector<8x32xi1>
    %33 = arith.select %32, %24, %23 : vector<8x32xi1>, vector<8x32xf32>
    %34 = vector.extract_strided_slice %8 {offsets = [0, 96], sizes = [8, 32], strides = [1, 1]} : vector<8x128xf32> to vector<8x32xf32>
    %35 = arith.subf %34, %0 : vector<8x32xf32>
    %36 = arith.mulf %35, %35 : vector<8x32xf32>
    %cst_11 = arith.constant dense<0.000000e+00> : vector<8xf32>
    %37 = vector.multi_reduction <add>, %36, %cst_11 [1] : vector<8x32xf32> to vector<8xf32>
    %38 = vector.shape_cast %37 : vector<8xf32> to vector<8x1xf32>
    %39 = arith.cmpf olt, %38, %30 : vector<8x1xf32>
    %40 = vector.shape_cast %39 : vector<8x1xi1> to vector<8x1xi1>
    %41 = vector.broadcast %40 : vector<8x1xi1> to vector<8x32xi1>
    %42 = arith.select %41, %34, %33 : vector<8x32xi1>, vector<8x32xf32>
    %c0_12 = arith.constant 0 : index
    %c0_13 = arith.constant 0 : index
    %43 = vector.load %arg4[%c0_12, %c0_13] : memref<8x96xf32, #tpu.memory_space<vmem>>, vector<8x32xf32>
    tpu.vector_store %arg4[%c0_12, %c0_13], %42 {strides = array<i32>} : memref<8x96xf32, #tpu.memory_space<vmem>>, vector<8x32xf32>,
    %c1 = arith.constant 1 : index
    %c0_14 = arith.constant 0 : index
    %c0_15 = arith.constant 0 : index
    %44 = vector.load %arg2[%c1, %c0_14, %c0_15] : memref<3x32x128xf32, #tpu.memory_space<vmem>>, vector<1x32x128xf32>
    %45 = vector.shape_cast %44 : vector<1x32x128xf32> to vector<32x128xf32>
    %c1_16 = arith.constant 1 : index
    %c0_17 = arith.constant 0 : index
    %c0_18 = arith.constant 0 : index
    %46 = vector.load %arg3[%c1_16, %c0_17, %c0_18] : memref<3x1x128xf32, #tpu.memory_space<vmem>>, vector<1x1x128xf32>
    %47 = vector.shape_cast %46 : vector<1x1x128xf32> to vector<1x128xf32>
    %cst_19 = arith.constant dense<0.000000e+00> : vector<8x128xf32>
    %48 = tpu.matmul %42, %45, %cst_19 {dimension_numbers = #tpu.dot_dimension_numbers<[1], [0], [0], [1], [0, 0, 1, 1], [], []>} : vector<8x32xf32>, vector<32x128xf32>, vector<8x128xf32> -> vector<8x128xf32>
    %49 = vector.broadcast %47 : vector<1x128xf32> to vector<8x128xf32>
    %50 = arith.addf %48, %49 : vector<8x128xf32>
    %51 = vector.extract_strided_slice %50 {offsets = [0, 0], sizes = [8, 32], strides = [1, 1]} : vector<8x128xf32> to vector<8x32xf32>
    %52 = arith.subf %51, %0 : vector<8x32xf32>
    %53 = arith.mulf %52, %52 : vector<8x32xf32>
    %cst_20 = arith.constant dense<0.000000e+00> : vector<8xf32>
    %54 = vector.multi_reduction <add>, %53, %cst_20 [1] : vector<8x32xf32> to vector<8xf32>
    %55 = vector.shape_cast %54 : vector<8xf32> to vector<8x1xf32>
    %56 = vector.extract_strided_slice %50 {offsets = [0, 32], sizes = [8, 32], strides = [1, 1]} : vector<8x128xf32> to vector<8x32xf32>
    %57 = arith.subf %56, %0 : vector<8x32xf32>
    %58 = arith.mulf %57, %57 : vector<8x32xf32>
    %cst_21 = arith.constant dense<0.000000e+00> : vector<8xf32>
    %59 = vector.multi_reduction <add>, %58, %cst_21 [1] : vector<8x32xf32> to vector<8xf32>
    %60 = vector.shape_cast %59 : vector<8xf32> to vector<8x1xf32>
    %61 = arith.cmpf olt, %60, %55 : vector<8x1xf32>
    %62 = arith.select %61, %60, %55 : vector<8x1xi1>, vector<8x1xf32>
    %63 = vector.shape_cast %61 : vector<8x1xi1> to vector<8x1xi1>
    %64 = vector.broadcast %63 : vector<8x1xi1> to vector<8x32xi1>
    %65 = arith.select %64, %56, %51 : vector<8x32xi1>, vector<8x32xf32>
    %66 = vector.extract_strided_slice %50 {offsets = [0, 64], sizes = [8, 32], strides = [1, 1]} : vector<8x128xf32> to vector<8x32xf32>
    %67 = arith.subf %66, %0 : vector<8x32xf32>
    %68 = arith.mulf %67, %67 : vector<8x32xf32>
    %cst_22 = arith.constant dense<0.000000e+00> : vector<8xf32>
    %69 = vector.multi_reduction <add>, %68, %cst_22 [1] : vector<8x32xf32> to vector<8xf32>
    %70 = vector.shape_cast %69 : vector<8xf32> to vector<8x1xf32>
    %71 = arith.cmpf olt, %70, %62 : vector<8x1xf32>
    %72 = arith.select %71, %70, %62 : vector<8x1xi1>, vector<8x1xf32>
    %73 = vector.shape_cast %71 : vector<8x1xi1> to vector<8x1xi1>
    %74 = vector.broadcast %73 : vector<8x1xi1> to vector<8x32xi1>
    %75 = arith.select %74, %66, %65 : vector<8x32xi1>, vector<8x32xf32>
    %76 = vector.extract_strided_slice %50 {offsets = [0, 96], sizes = [8, 32], strides = [1, 1]} : vector<8x128xf32> to vector<8x32xf32>
    %77 = arith.subf %76, %0 : vector<8x32xf32>
    %78 = arith.mulf %77, %77 : vector<8x32xf32>
    %cst_23 = arith.constant dense<0.000000e+00> : vector<8xf32>
    %79 = vector.multi_reduction <add>, %78, %cst_23 [1] : vector<8x32xf32> to vector<8xf32>
    %80 = vector.shape_cast %79 : vector<8xf32> to vector<8x1xf32>
    %81 = arith.cmpf olt, %80, %72 : vector<8x1xf32>
    %82 = vector.shape_cast %81 : vector<8x1xi1> to vector<8x1xi1>
    %83 = vector.broadcast %82 : vector<8x1xi1> to vector<8x32xi1>
    %84 = arith.select %83, %76, %75 : vector<8x32xi1>, vector<8x32xf32>
    %c0_24 = arith.constant 0 : index
    %c32 = arith.constant 32 : index
    %85 = vector.load %arg4[%c0_24, %c32] : memref<8x96xf32, #tpu.memory_space<vmem>>, vector<8x32xf32>
    tpu.vector_store %arg4[%c0_24, %c32], %84 {strides = array<i32>} : memref<8x96xf32, #tpu.memory_space<vmem>>, vector<8x32xf32>,
    %c2 = arith.constant 2 : index
    %c0_25 = arith.constant 0 : index
    %c0_26 = arith.constant 0 : index
    %86 = vector.load %arg2[%c2, %c0_25, %c0_26] : memref<3x32x128xf32, #tpu.memory_space<vmem>>, vector<1x32x128xf32>
    %87 = vector.shape_cast %86 : vector<1x32x128xf32> to vector<32x128xf32>
    %c2_27 = arith.constant 2 : index
    %c0_28 = arith.constant 0 : index
    %c0_29 = arith.constant 0 : index
    %88 = vector.load %arg3[%c2_27, %c0_28, %c0_29] : memref<3x1x128xf32, #tpu.memory_space<vmem>>, vector<1x1x128xf32>
    %89 = vector.shape_cast %88 : vector<1x1x128xf32> to vector<1x128xf32>
    %cst_30 = arith.constant dense<0.000000e+00> : vector<8x128xf32>
    %90 = tpu.matmul %84, %87, %cst_30 {dimension_numbers = #tpu.dot_dimension_numbers<[1], [0], [0], [1], [0, 0, 1, 1], [], []>} : vector<8x32xf32>, vector<32x128xf32>, vector<8x128xf32> -> vector<8x128xf32>
    %91 = vector.broadcast %89 : vector<1x128xf32> to vector<8x128xf32>
    %92 = arith.addf %90, %91 : vector<8x128xf32>
    %93 = vector.extract_strided_slice %92 {offsets = [0, 0], sizes = [8, 32], strides = [1, 1]} : vector<8x128xf32> to vector<8x32xf32>
    %94 = arith.subf %93, %0 : vector<8x32xf32>
    %95 = arith.mulf %94, %94 : vector<8x32xf32>
    %cst_31 = arith.constant dense<0.000000e+00> : vector<8xf32>
    %96 = vector.multi_reduction <add>, %95, %cst_31 [1] : vector<8x32xf32> to vector<8xf32>
    %97 = vector.shape_cast %96 : vector<8xf32> to vector<8x1xf32>
    %98 = vector.extract_strided_slice %92 {offsets = [0, 32], sizes = [8, 32], strides = [1, 1]} : vector<8x128xf32> to vector<8x32xf32>
    %99 = arith.subf %98, %0 : vector<8x32xf32>
    %100 = arith.mulf %99, %99 : vector<8x32xf32>
    %cst_32 = arith.constant dense<0.000000e+00> : vector<8xf32>
    %101 = vector.multi_reduction <add>, %100, %cst_32 [1] : vector<8x32xf32> to vector<8xf32>
    %102 = vector.shape_cast %101 : vector<8xf32> to vector<8x1xf32>
    %103 = arith.cmpf olt, %102, %97 : vector<8x1xf32>
    %104 = arith.select %103, %102, %97 : vector<8x1xi1>, vector<8x1xf32>
    %105 = vector.shape_cast %103 : vector<8x1xi1> to vector<8x1xi1>
    %106 = vector.broadcast %105 : vector<8x1xi1> to vector<8x32xi1>
    %107 = arith.select %106, %98, %93 : vector<8x32xi1>, vector<8x32xf32>
    %108 = vector.extract_strided_slice %92 {offsets = [0, 64], sizes = [8, 32], strides = [1, 1]} : vector<8x128xf32> to vector<8x32xf32>
    %109 = arith.subf %108, %0 : vector<8x32xf32>
    %110 = arith.mulf %109, %109 : vector<8x32xf32>
    %cst_33 = arith.constant dense<0.000000e+00> : vector<8xf32>
    %111 = vector.multi_reduction <add>, %110, %cst_33 [1] : vector<8x32xf32> to vector<8xf32>
    %112 = vector.shape_cast %111 : vector<8xf32> to vector<8x1xf32>
    %113 = arith.cmpf olt, %112, %104 : vector<8x1xf32>
    %114 = arith.select %113, %112, %104 : vector<8x1xi1>, vector<8x1xf32>
    %115 = vector.shape_cast %113 : vector<8x1xi1> to vector<8x1xi1>
    %116 = vector.broadcast %115 : vector<8x1xi1> to vector<8x32xi1>
    %117 = arith.select %116, %108, %107 : vector<8x32xi1>, vector<8x32xf32>
    %118 = vector.extract_strided_slice %92 {offsets = [0, 96], sizes = [8, 32], strides = [1, 1]} : vector<8x128xf32> to vector<8x32xf32>
    %119 = arith.subf %118, %0 : vector<8x32xf32>
    %120 = arith.mulf %119, %119 : vector<8x32xf32>
    %cst_34 = arith.constant dense<0.000000e+00> : vector<8xf32>
    %121 = vector.multi_reduction <add>, %120, %cst_34 [1] : vector<8x32xf32> to vector<8xf32>
    %122 = vector.shape_cast %121 : vector<8xf32> to vector<8x1xf32>
    %123 = arith.cmpf olt, %122, %114 : vector<8x1xf32>
    %124 = vector.shape_cast %123 : vector<8x1xi1> to vector<8x1xi1>
    %125 = vector.broadcast %124 : vector<8x1xi1> to vector<8x32xi1>
    %126 = arith.select %125, %118, %117 : vector<8x32xi1>, vector<8x32xf32>
    %c0_35 = arith.constant 0 : index
    %c64 = arith.constant 64 : index
    %127 = vector.load %arg4[%c0_35, %c64] : memref<8x96xf32, #tpu.memory_space<vmem>>, vector<8x32xf32>
    tpu.vector_store %arg4[%c0_35, %c64], %126 {strides = array<i32>} : memref<8x96xf32, #tpu.memory_space<vmem>>, vector<8x32xf32>,
    return
  }
  func.func @transform_0(%arg0: i32) -> (i32, i32) {
    %c0_i32 = arith.constant 0 : i32
    %c0_i32_0 = arith.constant 0 : i32
    return %arg0, %c0_i32 : i32, i32
  }
  func.func @transform_1(%arg0: i32) -> (i32, i32, i32) {
    %c0_i32 = arith.constant 0 : i32
    %c0_i32_0 = arith.constant 0 : i32
    %c0_i32_1 = arith.constant 0 : i32
    %c0_i32_2 = arith.constant 0 : i32
    return %c0_i32, %c0_i32_0, %c0_i32_1 : i32, i32, i32
  }
  func.func @transform_2(%arg0: i32) -> (i32, i32, i32) {
    %c0_i32 = arith.constant 0 : i32
    %c0_i32_0 = arith.constant 0 : i32
    %c0_i32_1 = arith.constant 0 : i32
    %c0_i32_2 = arith.constant 0 : i32
    return %c0_i32, %c0_i32_0, %c0_i32_1 : i32, i32, i32
  }
  func.func @transform_3(%arg0: i32) -> (i32, i32) {
    %c0_i32 = arith.constant 0 : i32
    %c0_i32_0 = arith.constant 0 : i32
    return %arg0, %c0_i32 : i32, i32
  }
}

</mosaic_0001>

<llo_original>
// kernel: tpu_custom_call.1
$region0: #{tpu_custom_call.1}
  #allocation0 [shape = 'u32[]', space=smem, size = 0x4, offset = 0x4, fixed_abs, tag = 'smem constant byte address 0x4 - core index']
  #allocation1 [shape = 'u32[72,128]{1,0:T(1,128)}', space=vmem, size = 0x9000, scoped, tag = 'internal scratch']
  %s0 = inlined_call_operand.hbm [shape: f32[8,32], index: 0, kind: input, shape index: {}]
  %s1 = inlined_call_operand.hbm [shape: f32[3,32,128], index: 1, kind: input, shape index: {}]
  %s2 = inlined_call_operand.hbm [shape: f32[3,1,128], index: 2, kind: input, shape index: {}]
  %s3 = inlined_call_operand.hbm [shape: f32[8,96], index: 3, kind: output, shape index: {}]
  %s4 = sld [smem:[#allocation0]]
  $region34: #{tpu_custom_call.1} parent=0
    _
  %s6 = ssub.s32 1, %s4
  %s7 = scalar_select 0, %s6, %s4
  $region1: #{tpu_custom_call.1} parent=0
    #allocation2 [shape = 'u8[4096]{0}', space=vmem, size = 0x1000, scoped, tag = 'input window, operand 0, single buffered']
    #allocation3 [shape = 's32[1]{0}', space=sflag, size = 0x4, scoped, tag = 'scoped memory for tpu_custom_call.1']
    #allocation4 [shape = 's32[1]{0}', space=sflag, size = 0x4, scoped, tag = 'scoped memory for tpu_custom_call.1']
    #allocation5 [shape = 'u8[49152]{0}', space=vmem, size = 0xc000, scoped, tag = 'input window, operand 1, single buffered']
    #allocation6 [shape = 's32[1]{0}', space=sflag, size = 0x4, scoped, tag = 'scoped memory for tpu_custom_call.1']
    #allocation7 [shape = 'u8[1536]{0}', space=vmem, size = 0x800, scoped, tag = 'input window, operand 2, single buffered']
    #allocation8 [shape = 'u8[4096]{0}', space=vmem, size = 0x1000, scoped, tag = 'output window, operand 0, single buffered']
    %8 = vsyncpa [#allocation3], 0
    %9 = vsyncpa [#allocation6], 0
    %10 = vsyncpa [#allocation4], 0
    // Predicated region
    $region2: #{tpu_custom_call.1} parent=1 // pred_check
      _
    $region3: #{tpu_custom_call.1} parent=1 // pred_check_branch
      %12 = sbr.rel (0) target = $region5
    $region4: #{tpu_custom_call.1} parent=1 // pred_region
      %14 = vsyncadd [#allocation3], 0
      %s16 = sshll.u32 %s0, 4
      %s17 = int_to_ptr.hbm [resolvable:$true] %s16
      %s18 = sshll.u32 [#allocation2], 4
      %s19 = int_to_ptr.vmem [resolvable:$true] %s18
      %21 = dma.hbm_to_vmem [thread:$0]  %s17, 128, %s19, [#allocation3]
    $region5: #{tpu_custom_call.1} parent=1 // pred_fallthru
      _
    // Predicated region
    $region6: #{tpu_custom_call.1} parent=1 // pred_check
      _
    $region7: #{tpu_custom_call.1} parent=1 // pred_check_branch
      %23 = sbr.rel (0) target = $region9
    $region8: #{tpu_custom_call.1} parent=1 // pred_region
      %25 = vsyncadd [#allocation6], 0
      %s26 = sshll.u32 %s1, 4
      %s27 = int_to_ptr.hbm [resolvable:$true] %s26
      %s28 = sshll.u32 [#allocation5], 4
      %s29 = int_to_ptr.vmem [resolvable:$true] %s28
      %34 = dma.hbm_to_vmem [thread:$0]  %s27, 1536, %s29, [#allocation6], 128, 128, 8
    $region9: #{tpu_custom_call.1} parent=1 // pred_fallthru
      _
    // Predicated region
    $region10: #{tpu_custom_call.1} parent=1 // pred_check
      _
    $region11: #{tpu_custom_call.1} parent=1 // pred_check_branch
      %36 = sbr.rel (0) target = $region13
    $region12: #{tpu_custom_call.1} parent=1 // pred_region
      %38 = vsyncadd [#allocation6], 0
      %s39 = sshll.u32 %s2, 4
      %s40 = int_to_ptr.hbm [resolvable:$true] %s39
      %s41 = sshll.u32 [#allocation7], 4
      %s42 = int_to_ptr.vmem [resolvable:$true] %s41
      %47 = dma.hbm_to_vmem [thread:$0]  %s40, 48, %s42, [#allocation6], 16, 16, 1
    $region13: #{tpu_custom_call.1} parent=1 // pred_fallthru
      _
    // Predicated region
    $region14: #{tpu_custom_call.1} parent=1 // pred_check
      _
    $region15: #{tpu_custom_call.1} parent=1 // pred_check_branch
      %49 = sbr.rel (0) target = $region17
    $region16: #{tpu_custom_call.1} parent=1 // pred_region
      %51 = dma.done [#allocation3], 128
    $region17: #{tpu_custom_call.1} parent=1 // pred_fallthru
      _
    // Predicated region
    $region18: #{tpu_custom_call.1} parent=1 // pred_check
      _
    $region19: #{tpu_custom_call.1} parent=1 // pred_check_branch
      %53 = sbr.rel (0) target = $region21
    $region20: #{tpu_custom_call.1} parent=1 // pred_region
      %55 = dma.done [#allocation6], 1536
    $region21: #{tpu_custom_call.1} parent=1 // pred_fallthru
      _
    // Predicated region
    $region22: #{tpu_custom_call.1} parent=1 // pred_check
      _
    $region23: #{tpu_custom_call.1} parent=1 // pred_check_branch
      %57 = sbr.rel (0) target = $region25
    $region24: #{tpu_custom_call.1} parent=1 // pred_region
      %59 = dma.done [#allocation6], 48
    $region25: #{tpu_custom_call.1} parent=1 // pred_fallthru
      _
    %v60 = vld [vmem:[#allocation2] sm:$0xff]
    %v61 = vld [vmem:[#allocation5] sm:$0xff]
    %v62 = vld [vmem:[#allocation5 + $0x8] sm:$0xff]
    %v63 = vld [vmem:[#allocation5 + $0x10] sm:$0xff]
    %v64 = vld [vmem:[#allocation5 + $0x18] sm:$0xff]
    %v65 = vld [vmem:[#allocation7] sm:$0x1]
    %v67 = vperm.slane %v65, 0
    %vm69 = vcmask 261120
    %v71 = vsel %vm69, 0.0, 0
    %73 = vmatpush.msra.mxu0 0.0
    %74 = vmatpush.msra.mxu0 0.0
    %75 = vmatpush.msra.mxu0 0.0
    %76 = vmatpush.msra.mxu0 0.0
    %77 = vmatpush.msra.mxu0 0.0
    %78 = vmatpush.msra.mxu0 0.0
    %79 = vmatpush.msra.mxu0 0.0
    %80 = vmatpush.msra.mxu0 0.0
    %81 = vmatpush.msra.mxu0 0.0
    %82 = vmatpush.msra.mxu0 0.0
    %83 = vmatpush.msra.mxu0 0.0
    %84 = vmatpush.msra.mxu0 0.0
    %85 = vmatpush.msra.mxu0 %v64
    %86 = vmatpush.msra.mxu0 %v63
    %87 = vmatpush.msra.mxu0 %v62
    %88 = vmatpush.msra.mxu0 %v61
    %89 = vmatmul.f32.gmra.mxu0 %v71
    %v90 = vpop.f32.mrf.mxu0
    %v91 = vadd.f32 %v67, %v90
    %92 = vdwg.mxu0
    %v93 = vsub.f32 %v91, %v60
    %v94 = vmul.f32 %v93, %v93
    %v95 = vsel %vm69, %v94, 0.0
    %96 = vadd.xlane.f32.xlu0 %v95
    %v97 = vpop.xlane.xlu0 %96
    %99 = vrot.lane.b32.xlu0 %v60, 32
    %v100 = vpop.permute.xlu0 %99
    %v102 = vsub.f32 %v91, %v100
    %v103 = vmul.f32 %v102, %v102
    %105 = vrot.lane.b32.xlu0 %v103, 96
    %v106 = vpop.permute.xlu0 %105
    %v108 = vsel %vm69, %v106, 0.0
    %109 = vadd.xlane.f32.xlu0 %v108
    %v110 = vpop.xlane.xlu0 %109
    %vm111 = vcmp.lt.f32.partialorder %v110, %v97
    %v112 = vsel %vm111, %v110, %v97
    %v113 = vsel %vm111, 1, 0
    %vm114 = vcmp.eq.s32.totalorder %v113, 1
    %116 = vrot.lane.b32.xlu0 %v91, 32
    %v117 = vpop.permute.xlu0 %116
    %v119 = vsel %vm114, %v91, %v117
    %120 = vrot.lane.b32.xlu0 %v60, 64
    %v121 = vpop.permute.xlu0 %120
    %v123 = vsub.f32 %v91, %v121
    %v124 = vmul.f32 %v123, %v123
    %126 = vrot.lane.b32.xlu0 %v124, 64
    %v127 = vpop.permute.xlu0 %126
    %v129 = vsel %vm69, %v127, 0.0
    %130 = vadd.xlane.f32.xlu0 %v129
    %v131 = vpop.xlane.xlu0 %130
    %vm132 = vcmp.lt.f32.partialorder %v131, %v112
    %v133 = vsel %vm132, %v131, %v112
    %v134 = vsel %vm132, 1, 0
    %vm135 = vcmp.eq.s32.totalorder %v134, 1
    %137 = vrot.lane.b32.xlu0 %v119, 32
    %v138 = vpop.permute.xlu0 %137
    %v140 = vsel %vm135, %v91, %v138
    %141 = vrot.lane.b32.xlu0 %v60, 96
    %v142 = vpop.permute.xlu0 %141
    %v144 = vsub.f32 %v91, %v142
    %v145 = vmul.f32 %v144, %v144
    %147 = vrot.lane.b32.xlu0 %v145, 32
    %v148 = vpop.permute.xlu0 %147
    %v150 = vsel %vm69, %v148, 0.0
    %151 = vadd.xlane.f32.xlu0 %v150
    %v152 = vpop.xlane.xlu0 %151
    %vm153 = vcmp.lt.f32.partialorder %v152, %v133
    %v154 = vsel %vm153, 1, 0
    %vm155 = vcmp.eq.s32.totalorder %v154, 1
    %157 = vrot.lane.b32.xlu0 %v140, 32
    %v158 = vpop.permute.xlu0 %157
    %v160 = vsel %vm155, %v91, %v158
    %162 = vrot.lane.b32.xlu0 %v160, 32
    %v163 = vpop.permute.xlu0 %162
    %165 = vst.msk [vmem:[#allocation8] sm:$0xff] %vm69, %v163
    %s166 = scalar_lea.vmem [#allocation5], 32
    %v167 = vld [vmem:[%s166] sm:$0xff]
    %v168 = vld [vmem:[%s166 + $0x8] sm:$0xff]
    %v169 = vld [vmem:[%s166 + $0x10] sm:$0xff]
    %v170 = vld [vmem:[%s166 + $0x18] sm:$0xff]
    %s171 = scalar_lea.vmem [#allocation7], 1
    %v172 = vld [vmem:[%s171] sm:$0x1]
    %v174 = vperm.slane %v172, 0
    %v176 = vsel %vm69, %v163, 0
    %178 = vmatpush.msra.mxu0 0.0
    %179 = vmatpush.msra.mxu0 0.0
    %180 = vmatpush.msra.mxu0 0.0
    %181 = vmatpush.msra.mxu0 0.0
    %182 = vmatpush.msra.mxu0 0.0
    %183 = vmatpush.msra.mxu0 0.0
    %184 = vmatpush.msra.mxu0 0.0
    %185 = vmatpush.msra.mxu0 0.0
    %186 = vmatpush.msra.mxu0 0.0
    %187 = vmatpush.msra.mxu0 0.0
    %188 = vmatpush.msra.mxu0 0.0
    %189 = vmatpush.msra.mxu0 0.0
    %190 = vmatpush.msra.mxu0 %v170
    %191 = vmatpush.msra.mxu0 %v169
    %192 = vmatpush.msra.mxu0 %v168
    %193 = vmatpush.msra.mxu0 %v167
    %194 = vmatmul.f32.gmra.mxu0 %v176
    %v195 = vpop.f32.mrf.mxu0
    %v196 = vadd.f32 %v174, %v195
    %197 = vdwg.mxu0
    %v198 = vsub.f32 %v196, %v60
    %v199 = vmul.f32 %v198, %v198
    %v200 = vsel %vm69, %v199, 0.0
    %201 = vadd.xlane.f32.xlu0 %v200
    %v202 = vpop.xlane.xlu0 %201
    %v203 = vsub.f32 %v196, %v100
    %v204 = vmul.f32 %v203, %v203
    %206 = vrot.lane.b32.xlu0 %v204, 96
    %v207 = vpop.permute.xlu0 %206
    %v209 = vsel %vm69, %v207, 0.0
    %210 = vadd.xlane.f32.xlu0 %v209
    %v211 = vpop.xlane.xlu0 %210
    %vm212 = vcmp.lt.f32.partialorder %v211, %v202
    %v213 = vsel %vm212, %v211, %v202
    %v214 = vsel %vm212, 1, 0
    %vm215 = vcmp.eq.s32.totalorder %v214, 1
    %217 = vrot.lane.b32.xlu0 %v196, 32
    %v218 = vpop.permute.xlu0 %217
    %v220 = vsel %vm215, %v196, %v218
    %v221 = vsub.f32 %v196, %v121
    %v222 = vmul.f32 %v221, %v221
    %224 = vrot.lane.b32.xlu0 %v222, 64
    %v225 = vpop.permute.xlu0 %224
    %v227 = vsel %vm69, %v225, 0.0
    %228 = vadd.xlane.f32.xlu0 %v227
    %v229 = vpop.xlane.xlu0 %228
    %vm230 = vcmp.lt.f32.partialorder %v229, %v213
    %v231 = vsel %vm230, %v229, %v213
    %v232 = vsel %vm230, 1, 0
    %vm233 = vcmp.eq.s32.totalorder %v232, 1
    %235 = vrot.lane.b32.xlu0 %v220, 32
    %v236 = vpop.permute.xlu0 %235
    %v238 = vsel %vm233, %v196, %v236
    %v239 = vsub.f32 %v196, %v142
    %v240 = vmul.f32 %v239, %v239
    %242 = vrot.lane.b32.xlu0 %v240, 32
    %v243 = vpop.permute.xlu0 %242
    %v245 = vsel %vm69, %v243, 0.0
    %246 = vadd.xlane.f32.xlu0 %v245
    %v247 = vpop.xlane.xlu0 %246
    %vm248 = vcmp.lt.f32.partialorder %v247, %v231
    %v249 = vsel %vm248, 1, 0
    %vm250 = vcmp.eq.s32.totalorder %v249, 1
    %252 = vrot.lane.b32.xlu0 %v238, 32
    %v253 = vpop.permute.xlu0 %252
    %v255 = vsel %vm250, %v196, %v253
    %257 = vrot.lane.b32.xlu0 %v255, 64
    %v258 = vpop.permute.xlu0 %257
    %vm260 = vcmask 523520
    %261 = vst.msk [vmem:[#allocation8] sm:$0xff] %vm260, %v258
    %s262 = scalar_lea.vmem [#allocation5], 64
    %v263 = vld [vmem:[%s262] sm:$0xff]
    %v264 = vld [vmem:[%s262 + $0x8] sm:$0xff]
    %v265 = vld [vmem:[%s262 + $0x10] sm:$0xff]
    %v266 = vld [vmem:[%s262 + $0x18] sm:$0xff]
    %s267 = scalar_lea.vmem [#allocation7], 2
    %v268 = vld [vmem:[%s267] sm:$0x1]
    %v270 = vperm.slane %v268, 0
    %272 = vrot.lane.b32.xlu0 %v255, 32
    %v273 = vpop.permute.xlu0 %272
    %v274 = vsel %vm69, %v273, 0
    %276 = vmatpush.msra.mxu0 0.0
    %277 = vmatpush.msra.mxu0 0.0
    %278 = vmatpush.msra.mxu0 0.0
    %279 = vmatpush.msra.mxu0 0.0
    %280 = vmatpush.msra.mxu0 0.0
    %281 = vmatpush.msra.mxu0 0.0
    %282 = vmatpush.msra.mxu0 0.0
    %283 = vmatpush.msra.mxu0 0.0
    %284 = vmatpush.msra.mxu0 0.0
    %285 = vmatpush.msra.mxu0 0.0
    %286 = vmatpush.msra.mxu0 0.0
    %287 = vmatpush.msra.mxu0 0.0
    %288 = vmatpush.msra.mxu0 %v266
    %289 = vmatpush.msra.mxu0 %v265
    %290 = vmatpush.msra.mxu0 %v264
    %291 = vmatpush.msra.mxu0 %v263
    %292 = vmatmul.f32.gmra.mxu0 %v274
    %v293 = vpop.f32.mrf.mxu0
    %v294 = vadd.f32 %v270, %v293
    %295 = vdwg.mxu0
    %v296 = vsub.f32 %v294, %v60
    %v297 = vmul.f32 %v296, %v296
    %v298 = vsel %vm69, %v297, 0.0
    %299 = vadd.xlane.f32.xlu0 %v298
    %v300 = vpop.xlane.xlu0 %299
    %v301 = vsub.f32 %v294, %v100
    %v302 = vmul.f32 %v301, %v301
    %304 = vrot.lane.b32.xlu0 %v302, 96
    %v305 = vpop.permute.xlu0 %304
    %v307 = vsel %vm69, %v305, 0.0
    %308 = vadd.xlane.f32.xlu0 %v307
    %v309 = vpop.xlane.xlu0 %308
    %vm310 = vcmp.lt.f32.partialorder %v309, %v300
    %v311 = vsel %vm310, %v309, %v300
    %v312 = vsel %vm310, 1, 0
    %vm313 = vcmp.eq.s32.totalorder %v312, 1
    %315 = vrot.lane.b32.xlu0 %v294, 32
    %v316 = vpop.permute.xlu0 %315
    %v318 = vsel %vm313, %v294, %v316
    %v319 = vsub.f32 %v294, %v121
    %v320 = vmul.f32 %v319, %v319
    %322 = vrot.lane.b32.xlu0 %v320, 64
    %v323 = vpop.permute.xlu0 %322
    %v325 = vsel %vm69, %v323, 0.0
    %326 = vadd.xlane.f32.xlu0 %v325
    %v327 = vpop.xlane.xlu0 %326
    %vm328 = vcmp.lt.f32.partialorder %v327, %v311
    %v329 = vsel %vm328, %v327, %v311
    %v330 = vsel %vm328, 1, 0
    %vm331 = vcmp.eq.s32.totalorder %v330, 1
    %333 = vrot.lane.b32.xlu0 %v318, 32
    %v334 = vpop.permute.xlu0 %333
    %v336 = vsel %vm331, %v294, %v334
    %v337 = vsub.f32 %v294, %v142
    %v338 = vmul.f32 %v337, %v337
    %340 = vrot.lane.b32.xlu0 %v338, 32
    %v341 = vpop.permute.xlu0 %340
    %v343 = vsel %vm69, %v341, 0.0
    %344 = vadd.xlane.f32.xlu0 %v343
    %v345 = vpop.xlane.xlu0 %344
    %vm346 = vcmp.lt.f32.partialorder %v345, %v329
    %v347 = vsel %vm346, 1, 0
    %vm348 = vcmp.eq.s32.totalorder %v347, 1
    %350 = vrot.lane.b32.xlu0 %v336, 32
    %v351 = vpop.permute.xlu0 %350
    %v353 = vsel %vm348, %v294, %v351
    %355 = vrot.lane.b32.xlu0 %v353, 96
    %v356 = vpop.permute.xlu0 %355
    %vm358 = vcmask 785920
    %359 = vst.msk [vmem:[#allocation8] sm:$0xff] %vm358, %v356
    // Predicated region
    $region26: #{tpu_custom_call.1} parent=1 // pred_check
      _
    $region27: #{tpu_custom_call.1} parent=1 // pred_check_branch
      %361 = sbr.rel (0) target = $region29
    $region28: #{tpu_custom_call.1} parent=1 // pred_region
      %363 = vsyncadd [#allocation4], 0
      %s365 = sshll.u32 [#allocation8], 4
      %s366 = int_to_ptr.vmem [resolvable:$true] %s365
      %s367 = sshll.u32 %s3, 4
      %s368 = int_to_ptr.hbm [resolvable:$true] %s367
      %370 = dma.vmem_to_hbm [thread:$0]  %s366, 128, %s368, [#allocation4]
    $region29: #{tpu_custom_call.1} parent=1 // pred_fallthru
      _
    // Predicated region
    $region30: #{tpu_custom_call.1} parent=1 // pred_check
      _
    $region31: #{tpu_custom_call.1} parent=1 // pred_check_branch
      %372 = sbr.rel (0) target = $region33
    $region32: #{tpu_custom_call.1} parent=1 // pred_region
      %374 = dma.done [#allocation4], 128
    $region33: #{tpu_custom_call.1} parent=1 // pred_fallthru
      _
    %375 = vsyncpa [#allocation3], 1
    %376 = vsyncpa [#allocation6], 1
    %377 = vsyncpa [#allocation4], 1

</llo_original>
